<compile_context>
chip_gen: v6e
topology: v6e:2x2x1
jax: 0.10.0
libtpu: 0.0.40
codegen_flags: <defaults>
</compile_context>

<pallas_src>
import jax
import jax.numpy as jnp
from jax.experimental import pallas as pl
from jax.experimental.pallas import tpu as pltpu


def _identity_dma_kernel(x_ref, o_ref, sem):
    # One direct src -> dst copy: 1x traffic, no vreg load/store, no grid steps.
    cp = pltpu.make_async_copy(x_ref, o_ref, sem)
    cp.start()
    cp.wait()


@jax.jit
def module_a_forward(x):
    """Pallas implementation of A.forward: returns x unchanged."""
    orig_shape = x.shape
    total = x.size
    lane = 128

    if total > 0 and total % lane == 0:
        # Free (layout-preserving) reshape to a lane-dense 2D slab.
        slab = x.reshape(total // lane, lane)
    else:
        # DMA copies handle arbitrary full-array shapes; no padding round trip.
        slab = x

    out = pl.pallas_call(
        _identity_dma_kernel,
        out_shape=jax.ShapeDtypeStruct(slab.shape, slab.dtype),
        in_specs=[pl.BlockSpec(memory_space=pl.ANY)],
        out_specs=pl.BlockSpec(memory_space=pl.ANY),
        scratch_shapes=[pltpu.SemaphoreType.DMA],
    )(slab)

    return out.reshape(orig_shape)


if __name__ == "__main__":
    key = jax.random.PRNGKey(0)
    x = jax.random.normal(key, (2, 4, 16, 16), dtype=jnp.float32)

    y = module_a_forward(x)
    jax.block_until_ready(y)

    assert y.shape == x.shape and y.dtype == x.dtype
    assert bool(jnp.all(y == x))
    print("KERNEL_OK")
</pallas_src>

<mosaic_0001>
module attributes {stable_mosaic.version = 11 : i64} {
  func.func @_identity_dma_kernel(%arg0: memref<16x128xf32, #tpu.memory_space<any>>, %arg1: memref<16x128xf32, #tpu.memory_space<any>>, %arg2: memref<!tpu.dma_semaphore, #tpu.memory_space<semaphore_mem>>) attributes {dimension_semantics = [], scalar_prefetch = 0 : i64, scratch_operands = 1 : i64, tpu.core_type = #tpu.core_type<tc>} {
    tpu.enqueue_dma source(%arg0 : memref<16x128xf32, #tpu.memory_space<any>>) target(%arg1 : memref<16x128xf32, #tpu.memory_space<any>>) target_semaphore(%arg2 : memref<!tpu.dma_semaphore, #tpu.memory_space<semaphore_mem>>)
    tpu.wait_dma2 semaphore(%arg2 : memref<!tpu.dma_semaphore, #tpu.memory_space<semaphore_mem>>) src(%arg0 : memref<16x128xf32, #tpu.memory_space<any>>) dst(%arg1 : memref<16x128xf32, #tpu.memory_space<any>>)
    return
  }
}

</mosaic_0001>

<llo_original>
// kernel: module_a_forward.1
$region0: #{module_a_forward.1}
  #allocation0 [shape = 'u32[]', space=smem, size = 0x4, offset = 0x4, fixed_abs, tag = 'smem constant byte address 0x4 - core index']
  #allocation1 [shape = 'u32[144,128]{1,0:T(1,128)}', space=vmem, size = 0x12000, scoped, tag = 'internal scratch']
  #allocation2 [shape = 's32[1]{0}', space=sflag, size = 0x4, scoped, tag = 'scratch operand']
  #allocation3 [shape = 's32[]', space=sflag, size = 0x4, offset = 0, fixed_abs, tag = 'sflag constant byte address 0x0 - dummy sync flag']
  %s0 = inlined_call_operand.vmem [shape: f32[16,128], index: 0, kind: input, shape index: {}]
  %s1 = inlined_call_operand.vmem [shape: f32[16,128], index: 1, kind: output, shape index: {}]
  %s2 = sld [smem:[#allocation0]]
  $region36: #{module_a_forward.1} parent=0
    _
  %s4 = ssub.s32 1, %s2
  %s5 = scalar_select 0, %s4, %s2
  %p7 = scmp.lt.u32.totalorder 16, 8
  %p8 = pneg %p7
  // Predicated region
  $region2: #{module_a_forward.1} parent=0 // pred_check
    _
  $region3: #{module_a_forward.1} parent=0 // pred_check_branch
    %10 = sbr.rel (%p7) target = $region5
  $region4: #{module_a_forward.1} parent=0 // pred_region
    %s26 = sand.u32 16, 7
    %p27 = scmp.eq.s32.totalorder %s26, 0
    // Predicated region
    $region17: #{module_a_forward.1} parent=4 // pred_check
      %p28 = pneg %p27
    $region18: #{module_a_forward.1} parent=4 // pred_check_branch
      %30 = sbr.rel (%p28) target = $region20
    $region19: #{module_a_forward.1} parent=4 // pred_region
      loop: start=0, step=1, limit=1
      $region21: #{module_a_forward.1} parent=19 // loop_pre_header
        _
      $region22: #{module_a_forward.1} parent=19 // loop_header
        %s32 = sphi 0, %s36
        %p33 = scmp.ge.s32.totalorder %s32, 1
        %s37 = sphi %s0, %s0
        %s38 = sphi %s1, %s1
      $region23: #{module_a_forward.1} parent=19 // loop_header_branch
        %35 = sbr.rel (%p33) target = $region27
      $region24: #{module_a_forward.1} parent=19 // loop_body
        %v39 = vld [vmem:[%s37] sm:$0xff]
        %40 = vst [vmem:[%s38] sm:$0xff] %v39
        %v41 = vld [vmem:[%s37 + $0x8] sm:$0xff]
        %42 = vst [vmem:[%s38 + $0x8] sm:$0xff] %v41
      $region25: #{module_a_forward.1} parent=19 // loop_footer
        %s36 = sadd.s32 1, %s32
      $region26: #{module_a_forward.1} parent=19 // loop_footer_branch
        %31 = sbr.rel target = $region22
      $region27: #{module_a_forward.1} parent=19 // loop_exit
        _
    $region20: #{module_a_forward.1} parent=4 // pred_fallthru
      _
    %p43 = pneg %p27
    // Predicated region
    $region28: #{module_a_forward.1} parent=4 // pred_check
      _
    $region29: #{module_a_forward.1} parent=4 // pred_check_branch
      %45 = sbr.rel (%p27) target = $region31
    $region30: #{module_a_forward.1} parent=4 // pred_region
      %s46 = sand.u32 16, 7
    $region31: #{module_a_forward.1} parent=4 // pred_fallthru
      _
  $region5: #{module_a_forward.1} parent=0 // pred_fallthru
    _
  // Predicated region
  $region6: #{module_a_forward.1} parent=0 // pred_check
    %p11 = pneg %p7
  $region7: #{module_a_forward.1} parent=0 // pred_check_branch
    %13 = sbr.rel (%p11) target = $region9
  $region8: #{module_a_forward.1} parent=0 // pred_region
    %s14 = sshll.u32 1, 16
    %s15 = ssub.s32 %s14, 1
    loop: start=0, step=1, limit=1
    $region10: #{module_a_forward.1} parent=8 // loop_pre_header
      _
    $region11: #{module_a_forward.1} parent=8 // loop_header
      %s17 = sphi 0, %s21
      %p18 = scmp.ge.s32.totalorder %s17, 1
      %s22 = sphi %s0, %s0
      %s23 = sphi %s1, %s1
    $region12: #{module_a_forward.1} parent=8 // loop_header_branch
      %20 = sbr.rel (%p18) target = $region16
    $region13: #{module_a_forward.1} parent=8 // loop_body
      %v24 = vld [vmem:[%s22] sm:%s15]
      %25 = vst [vmem:[%s23] sm:%s15] %v24
    $region14: #{module_a_forward.1} parent=8 // loop_footer
      %s21 = sadd.s32 1, %s17
    $region15: #{module_a_forward.1} parent=8 // loop_footer_branch
      %16 = sbr.rel target = $region11
    $region16: #{module_a_forward.1} parent=8 // loop_exit
      _
  $region9: #{module_a_forward.1} parent=0 // pred_fallthru
    _
  // Predicated region
  $region32: #{module_a_forward.1} parent=0 // pred_check
    _
  $region33: #{module_a_forward.1} parent=0 // pred_check_branch
    %49 = sbr.rel (0) target = $region35
  $region34: #{module_a_forward.1} parent=0 // pred_region
    %50 = vsyncadd [#allocation2], 256
  $region35: #{module_a_forward.1} parent=0 // pred_fallthru
    _
  %s51 = smul.u32 16, 1
  %s52 = sshll.u32 %s51, 4
  %53 = dma.done [#allocation2], %s52
  %54 = vsyncmov [#allocation2]
  %s55 = vpop.sfrf %54
  %p56 = scmp.eq.s32.totalorder %s55, 0
  %p57 = pneg %p56
  %59 = shalt.err (%p57)

</llo_original>
